<compile_context>
chip_gen: v7x
topology: tpu7x:2x2x1
jax: 0.10.0
libtpu: 0.0.40
codegen_flags: <defaults>
</compile_context>

<pallas_src>
import functools

import jax
import jax.numpy as jnp
import numpy as np
from jax.experimental import pallas as pl
from jax.experimental.pallas import tpu as pltpu


def _round_up(v, m):
    return ((v + m - 1) // m) * m


def _dcl_kernel(bi_ref, bj_ref, xi_ref, xj_ref, sqc_ref, sqr_ref,
                labc_ref, labr_ref, out_ref, acc_ref, *,
                n_points, tile, diff_weight, inv_nm1):
    """One upper-triangular (row-tile, col-tile) block pair.

    bi_ref/bj_ref: (num_pairs,) int32 SMEM  -- prefetched block-pair table
    xi_ref:  (T, Dp) f32 VMEM  -- row tile of points
    xj_ref:  (T, Dp) f32 VMEM  -- column tile of points (same HBM array)
    sqc_ref: (T, 1)  f32 VMEM  -- squared norms of the row tile
    sqr_ref: (1, T)  f32 VMEM  -- squared norms of the column tile
    labc_ref:(T, 1)  i32 VMEM  -- labels of the row tile
    labr_ref:(1, T)  i32 VMEM  -- labels of the column tile
    out_ref: (1, 1)  f32 SMEM  -- scalar loss (written once, at the last step)
    acc_ref: (T, T)  f32 VMEM  -- element-wise running accumulator
    """
    p = pl.program_id(0)

    @pl.when(p == 0)
    def _():
        acc_ref[...] = jnp.zeros_like(acc_ref)

    bi = bi_ref[p]
    bj = bj_ref[p]

    # Gram-matrix pairwise squared distances: one MXU matmul (contract on D).
    gram = jax.lax.dot_general(
        xi_ref[...], xj_ref[...], (((1,), (1,)), ((), ())),
        preferred_element_type=jnp.float32)
    d2 = jnp.maximum(sqc_ref[...] + sqr_ref[...] - 2.0 * gram, 0.0)

    # Rebuild the PyTorch accumulation weights in-kernel (VPU work, no HBM):
    #   col == row+1 -> 2,  col > row+1 -> 1,  col <= row -> 0,  padding -> 0.
    row = bi * tile + jax.lax.broadcasted_iota(jnp.int32, d2.shape, 0)
    col = bj * tile + jax.lax.broadcasted_iota(jnp.int32, d2.shape, 1)
    valid = (col > row) & (col < n_points)
    w = jnp.where(valid, jnp.where(col == row + 1, 2.0, 1.0), 0.0)

    same = labc_ref[...] == labr_ref[...]            # (T,1) == (1,T) -> (T,T)

    # Single EUP transcendental:  d = d2*inv,  diffW/d = diffW*inv.
    # The eps guards the diagonal / zero-padded pairs (their weights are 0).
    inv = jax.lax.rsqrt(jnp.maximum(d2, 1e-12))
    acc_ref[...] += w * jnp.where(same, d2, diff_weight) * inv

    @pl.when(p == pl.num_programs(0) - 1)
    def _():
        out_ref[0, 0] = jnp.sum(acc_ref[...]) * inv_nm1


def _distance_cluster_loss_xla(x, labels, difference_weight):
    """Plain-XLA path for small point counts (kernel launch not worth it)."""
    n = x.shape[0]
    sq = jnp.sum(x * x, axis=1)
    d2 = jnp.maximum(sq[:, None] + sq[None, :] - 2.0 * (x @ x.T), 0.0)
    inv = jax.lax.rsqrt(jnp.maximum(d2, 1e-12))
    row = jnp.arange(n, dtype=jnp.int32)[:, None]
    col = jnp.arange(n, dtype=jnp.int32)[None, :]
    w = jnp.where(col == row + 1, 2.0, jnp.where(col > row, 1.0, 0.0))
    same = labels[:, None] == labels[None, :]
    total = jnp.sum(w * jnp.where(same, d2, difference_weight) * inv)
    return total / jnp.float32(n - 1)


def distance_cluster_loss(preds, labels, *, difference_weight=10.0,
                          use_pallas=None):
    """preds: (N, 1, 1, D) float, labels: (N,) int -> scalar float32 loss."""
    N = preds.shape[0]
    x = preds.reshape(N, -1).astype(jnp.float32)     # (N, D)
    D = x.shape[1]
    labels = jnp.asarray(labels, dtype=jnp.int32).reshape(N)

    if N < 2:
        return jnp.float32(0.0)

    if use_pallas is None:
        use_pallas = N >= 512                         # XLA fuses tiny N better
    if not use_pallas:
        return _distance_cluster_loss_xla(x, labels, float(difference_weight))

    # ---- Host-side layout plumbing (no O(N^2) work here) --------------------
    T = 256 if N >= 256 else _round_up(N, 8)          # MXU-sized tiles (v6e/v7x)
    Np = _round_up(N, T)
    Dp = _round_up(D, 128)

    x_p = jnp.pad(x, ((0, Np - N), (0, Dp - D)))      # zero pad: distances unchanged
    sq = jnp.sum(x_p * x_p, axis=1)                   # (Np,) f32 row norms
    sq_col = sq[:, None]                              # (Np, 1)
    sq_row = sq[None, :]                              # (1, Np)
    lab_p = jnp.pad(labels, (0, Np - N))              # padded pairs get weight 0
    lab_col = lab_p[:, None]                          # (Np, 1)
    lab_row = lab_p[None, :]                          # (1, Np)

    # Upper-triangular block-pair table (bj >= bi), row-major so the xi block
    # index is constant across consecutive steps (its re-copy is elided).
    nb = Np // T
    pairs = [(i, j) for i in range(nb) for j in range(i, nb)]
    bi_tab = jnp.asarray([p[0] for p in pairs], dtype=jnp.int32)
    bj_tab = jnp.asarray([p[1] for p in pairs], dtype=jnp.int32)
    num_pairs = len(pairs)

    kernel = functools.partial(
        _dcl_kernel,
        n_points=N, tile=T,
        diff_weight=float(difference_weight),
        inv_nm1=float(1.0 / (N - 1)))

    out = pl.pallas_call(
        kernel,
        out_shape=jax.ShapeDtypeStruct((1, 1), jnp.float32),
        grid_spec=pltpu.PrefetchScalarGridSpec(
            num_scalar_prefetch=2,
            grid=(num_pairs,),
            in_specs=[
                pl.BlockSpec((T, Dp), lambda p, bi, bj: (bi[p], 0)),   # xi
                pl.BlockSpec((T, Dp), lambda p, bi, bj: (bj[p], 0)),   # xj
                pl.BlockSpec((T, 1), lambda p, bi, bj: (bi[p], 0)),    # |xi|^2
                pl.BlockSpec((1, T), lambda p, bi, bj: (0, bj[p])),    # |xj|^2
                pl.BlockSpec((T, 1), lambda p, bi, bj: (bi[p], 0)),    # labels_i
                pl.BlockSpec((1, T), lambda p, bi, bj: (0, bj[p])),    # labels_j
            ],
            out_specs=pl.BlockSpec((1, 1), lambda p, bi, bj: (0, 0),
                                   memory_space=pltpu.MemorySpace.SMEM),
            scratch_shapes=[pltpu.VMEM((T, T), jnp.float32)],
        ),
        compiler_params=pltpu.CompilerParams(
            # Loss accumulates across the block-pair axis -> reduction axis.
            dimension_semantics=("arbitrary",),
            # Column tiling already bounds the footprint (~1-2 MiB); this just
            # raises v5e's 16 MiB default to a comfortable value.
            vmem_limit_bytes=32 * 1024 * 1024),
    )(bi_tab, bj_tab, x_p, x_p, sq_col, sq_row, lab_col, lab_row)
    return out[0, 0]


def _numpy_reference(preds, labels, difference_weight=10.0):
    """float64 reference mirroring the PyTorch .double() loop exactly."""
    n = preds.shape[0]
    xp = np.asarray(preds, dtype=np.float64).reshape(n, -1)
    lb = np.asarray(labels)
    sq = (xp * xp).sum(axis=1)
    d2 = np.maximum(sq[:, None] + sq[None, :] - 2.0 * (xp @ xp.T), 0.0)
    d = np.sqrt(d2)
    d_safe = np.where(d > 0.0, d, 1.0)
    same = lb[:, None] == lb[None, :]
    v = np.where(same, d, difference_weight / d_safe)
    row = np.arange(n)[:, None]
    col = np.arange(n)[None, :]
    coeff = np.where(col == row + 1, 2.0, np.where(col > row, 1.0, 0.0))
    pred_loss = (coeff * v).sum(axis=1)[: n - 1]
    return float(pred_loss.mean())


if __name__ == "__main__":
    key = jax.random.PRNGKey(0)
    k1, k2, k3, k4 = jax.random.split(key, 4)
    d = 200                                  # each pred is Tensor(1, 1, 200)

    # Case 1: the module's actual regime -- small buffered point count (N=8).
    n_small = 8
    preds_s = jax.random.normal(k1, (n_small, 1, 1, d), dtype=jnp.float32)
    labels_s = jax.random.randint(k2, (n_small,), 0, 3, dtype=jnp.int32)
    ref_s = _numpy_reference(preds_s, labels_s)

    loss_s_auto = jax.block_until_ready(distance_cluster_loss(preds_s, labels_s))
    loss_s_pal = jax.block_until_ready(
        distance_cluster_loss(preds_s, labels_s, use_pallas=True))
    assert abs(float(loss_s_auto) - ref_s) / abs(ref_s) < 1e-4, (float(loss_s_auto), ref_s)
    assert abs(float(loss_s_pal) - ref_s) / abs(ref_s) < 1e-4, (float(loss_s_pal), ref_s)

    # Case 2: larger buffer -> exercises the tiled, triangular-block Pallas path
    # (2x2 block grid -> 3 upper-triangle block pairs).
    n_big = 384
    preds_b = jax.random.normal(k3, (n_big, 1, 1, d), dtype=jnp.float32)
    labels_b = jax.random.randint(k4, (n_big,), 0, 3, dtype=jnp.int32)
    ref_b = _numpy_reference(preds_b, labels_b)

    loss_b = jax.block_until_ready(
        distance_cluster_loss(preds_b, labels_b, use_pallas=True))
    assert abs(float(loss_b) - ref_b) / abs(ref_b) < 1e-3, (float(loss_b), ref_b)

    print("KERNEL_OK")
</pallas_src>

<mosaic_0001>
module attributes {stable_mosaic.version = 11 : i64} {
  func.func @_dcl_kernel(%arg0: i32, %arg1: memref<1xi32, #tpu.memory_space<smem>>, %arg2: memref<1xi32, #tpu.memory_space<smem>>, %arg3: memref<8x256xf32, #tpu.memory_space<vmem>>, %arg4: memref<8x256xf32, #tpu.memory_space<vmem>>, %arg5: memref<8x1xf32, #tpu.memory_space<vmem>>, %arg6: memref<1x8xf32, #tpu.memory_space<vmem>>, %arg7: memref<8x1xi32, #tpu.memory_space<vmem>>, %arg8: memref<1x8xi32, #tpu.memory_space<vmem>>, %arg9: memref<1x1xf32, #tpu.memory_space<smem>>, %arg10: memref<8x8xf32, #tpu.memory_space<vmem>>) attributes {dimension_semantics = [#tpu.dimension_semantics<arbitrary>], iteration_bounds = array<i64: 1>, scalar_prefetch = 2 : i64, scratch_operands = 1 : i64, tpu.core_type = #tpu.core_type<tc>, window_params = [{transform_indices = @transform_0, window_bounds = array<i64: 8, 256>}, {transform_indices = @transform_1, window_bounds = array<i64: 8, 256>}, {transform_indices = @transform_2, window_bounds = array<i64: 8, 1>}, {transform_indices = @transform_3, window_bounds = array<i64: 1, 8>}, {transform_indices = @transform_4, window_bounds = array<i64: 8, 1>}, {transform_indices = @transform_5, window_bounds = array<i64: 1, 8>}, {transform_indices = @transform_6, window_bounds = array<i64: 1, 1>}]} {
    %c0_i32 = arith.constant 0 : i32
    %0 = arith.cmpi eq, %arg0, %c0_i32 : i32
    %1 = arith.extui %0 : i1 to i32
    %c0_i32_0 = arith.constant 0 : i32
    %2 = arith.cmpi ne, %1, %c0_i32_0 : i32
    scf.if %2 {
      %cst_27 = arith.constant 0.000000e+00 : f32
      %58 = vector.broadcast %cst_27 : f32 to vector<8x8xf32>
      %c0_28 = arith.constant 0 : index
      %c0_29 = arith.constant 0 : index
      %59 = vector.load %arg10[%c0_28, %c0_29] : memref<8x8xf32, #tpu.memory_space<vmem>>, vector<8x8xf32>
      tpu.vector_store %arg10[%c0_28, %c0_29], %58 {strides = array<i32>} : memref<8x8xf32, #tpu.memory_space<vmem>>, vector<8x8xf32>,
    } else {
    }
    %3 = arith.index_cast %arg0 : i32 to index
    %4 = memref.load %arg1[%3] : memref<1xi32, #tpu.memory_space<smem>>
    %5 = arith.index_cast %arg0 : i32 to index
    %6 = memref.load %arg2[%5] : memref<1xi32, #tpu.memory_space<smem>>
    %c0 = arith.constant 0 : index
    %c0_1 = arith.constant 0 : index
    %7 = vector.load %arg3[%c0, %c0_1] : memref<8x256xf32, #tpu.memory_space<vmem>>, vector<8x256xf32>
    %c0_2 = arith.constant 0 : index
    %c0_3 = arith.constant 0 : index
    %8 = vector.load %arg4[%c0_2, %c0_3] : memref<8x256xf32, #tpu.memory_space<vmem>>, vector<8x256xf32>
    %cst = arith.constant dense<0.000000e+00> : vector<8x8xf32>
    %9 = tpu.matmul %7, %8, %cst {dimension_numbers = #tpu.dot_dimension_numbers<[1], [1], [0], [0], [0, 0, 1, 0], [], []>} : vector<8x256xf32>, vector<8x256xf32>, vector<8x8xf32> -> vector<8x8xf32>
    %c0_4 = arith.constant 0 : index
    %c0_5 = arith.constant 0 : index
    %10 = vector.load %arg5[%c0_4, %c0_5] : memref<8x1xf32, #tpu.memory_space<vmem>>, vector<8x1xf32>
    %c0_6 = arith.constant 0 : index
    %c0_7 = arith.constant 0 : index
    %11 = vector.load %arg6[%c0_6, %c0_7] : memref<1x8xf32, #tpu.memory_space<vmem>>, vector<1x8xf32>
    %12 = vector.broadcast %10 : vector<8x1xf32> to vector<8x8xf32>
    %13 = vector.broadcast %11 : vector<1x8xf32> to vector<8x8xf32>
    %14 = arith.addf %12, %13 : vector<8x8xf32>
    %cst_8 = arith.constant 2.000000e+00 : f32
    %15 = vector.broadcast %cst_8 : f32 to vector<8x8xf32>
    %16 = arith.mulf %15, %9 : vector<8x8xf32>
    %17 = arith.subf %14, %16 : vector<8x8xf32>
    %cst_9 = arith.constant 0.000000e+00 : f32
    %18 = vector.broadcast %cst_9 : f32 to vector<8x8xf32>
    %19 = arith.maximumf %17, %18 : vector<8x8xf32>
    %c8_i32 = arith.constant 8 : i32
    %20 = arith.muli %4, %c8_i32 : i32
    %21 = tpu.iota {dimensions = array<i32: 0>} : vector<8x8xi32>
    %22 = vector.broadcast %20 : i32 to vector<8x8xi32>
    %23 = arith.addi %22, %21 : vector<8x8xi32>
    %c8_i32_10 = arith.constant 8 : i32
    %24 = arith.muli %6, %c8_i32_10 : i32
    %25 = tpu.iota {dimensions = array<i32: 1>} : vector<8x8xi32>
    %26 = vector.broadcast %24 : i32 to vector<8x8xi32>
    %27 = arith.addi %26, %25 : vector<8x8xi32>
    %28 = arith.cmpi sgt, %27, %23 : vector<8x8xi32>
    %c8_i32_11 = arith.constant 8 : i32
    %29 = vector.broadcast %c8_i32_11 : i32 to vector<8x8xi32>
    %30 = arith.cmpi slt, %27, %29 : vector<8x8xi32>
    %31 = arith.andi %28, %30 : vector<8x8xi1>
    %c1_i32 = arith.constant 1 : i32
    %32 = vector.broadcast %c1_i32 : i32 to vector<8x8xi32>
    %33 = arith.addi %23, %32 : vector<8x8xi32>
    %34 = arith.cmpi eq, %27, %33 : vector<8x8xi32>
    %cst_12 = arith.constant 2.000000e+00 : f32
    %cst_13 = arith.constant 1.000000e+00 : f32
    %35 = vector.broadcast %cst_12 : f32 to vector<8x8xf32>
    %36 = vector.broadcast %cst_13 : f32 to vector<8x8xf32>
    %37 = arith.select %34, %35, %36 : vector<8x8xi1>, vector<8x8xf32>
    %cst_14 = arith.constant 0.000000e+00 : f32
    %38 = vector.broadcast %cst_14 : f32 to vector<8x8xf32>
    %39 = arith.select %31, %37, %38 : vector<8x8xi1>, vector<8x8xf32>
    %c0_15 = arith.constant 0 : index
    %c0_16 = arith.constant 0 : index
    %40 = vector.load %arg7[%c0_15, %c0_16] : memref<8x1xi32, #tpu.memory_space<vmem>>, vector<8x1xi32>
    %c0_17 = arith.constant 0 : index
    %c0_18 = arith.constant 0 : index
    %41 = vector.load %arg8[%c0_17, %c0_18] : memref<1x8xi32, #tpu.memory_space<vmem>>, vector<1x8xi32>
    %42 = vector.broadcast %40 : vector<8x1xi32> to vector<8x8xi32>
    %43 = vector.broadcast %41 : vector<1x8xi32> to vector<8x8xi32>
    %44 = arith.cmpi eq, %42, %43 : vector<8x8xi32>
    %cst_19 = arith.constant 9.99999996E-13 : f32
    %45 = vector.broadcast %cst_19 : f32 to vector<8x8xf32>
    %46 = arith.maximumf %19, %45 : vector<8x8xf32>
    %47 = math.rsqrt %46 : vector<8x8xf32>
    %c0_20 = arith.constant 0 : index
    %c0_21 = arith.constant 0 : index
    %48 = vector.load %arg10[%c0_20, %c0_21] : memref<8x8xf32, #tpu.memory_space<vmem>>, vector<8x8xf32>
    %cst_22 = arith.constant 1.000000e+01 : f32
    %49 = vector.broadcast %cst_22 : f32 to vector<8x8xf32>
    %50 = arith.select %44, %19, %49 : vector<8x8xi1>, vector<8x8xf32>
    %51 = arith.mulf %39, %50 : vector<8x8xf32>
    %52 = arith.mulf %51, %47 : vector<8x8xf32>
    %53 = arith.addf %48, %52 : vector<8x8xf32>
    %c0_23 = arith.constant 0 : index
    %c0_24 = arith.constant 0 : index
    %54 = vector.load %arg10[%c0_23, %c0_24] : memref<8x8xf32, #tpu.memory_space<vmem>>, vector<8x8xf32>
    tpu.vector_store %arg10[%c0_23, %c0_24], %53 {strides = array<i32>} : memref<8x8xf32, #tpu.memory_space<vmem>>, vector<8x8xf32>,
    %c0_i32_25 = arith.constant 0 : i32
    %55 = arith.cmpi eq, %arg0, %c0_i32_25 : i32
    %56 = arith.extui %55 : i1 to i32
    %c0_i32_26 = arith.constant 0 : i32
    %57 = arith.cmpi ne, %56, %c0_i32_26 : i32
    scf.if %57 {
      %c0_27 = arith.constant 0 : index
      %c0_28 = arith.constant 0 : index
      %58 = vector.load %arg10[%c0_27, %c0_28] : memref<8x8xf32, #tpu.memory_space<vmem>>, vector<8x8xf32>
      %59 = vector.shape_cast %58 : vector<8x8xf32> to vector<1x8x8xf32>
      %cst_29 = arith.constant dense<0.000000e+00> : vector<1xf32>
      %60 = vector.multi_reduction <add>, %59, %cst_29 [1, 2] : vector<1x8x8xf32> to vector<1xf32>
      %61 = vector.shape_cast %60 : vector<1xf32> to vector<1x1x1xf32>
      %62 = vector.extract %61[0, 0, 0] : f32 from vector<1x1x1xf32>
      %cst_30 = arith.constant 0.142857149 : f32
      %63 = arith.mulf %62, %cst_30 : f32
      %c0_31 = arith.constant 0 : index
      %c0_32 = arith.constant 0 : index
      %64 = memref.load %arg9[%c0_31, %c0_32] : memref<1x1xf32, #tpu.memory_space<smem>>
      memref.store %63, %arg9[%c0_31, %c0_32] : memref<1x1xf32, #tpu.memory_space<smem>>
    } else {
    }
    return
  }
  func.func @transform_0(%arg0: i32, %arg1: memref<1xi32, #tpu.memory_space<smem>>, %arg2: memref<1xi32, #tpu.memory_space<smem>>) -> (i32, i32) {
    %0 = arith.index_cast %arg0 : i32 to index
    %1 = memref.load %arg1[%0] : memref<1xi32, #tpu.memory_space<smem>>
    %c0_i32 = arith.constant 0 : i32
    %c0_i32_0 = arith.constant 0 : i32
    return %1, %c0_i32 : i32, i32
  }
  func.func @transform_1(%arg0: i32, %arg1: memref<1xi32, #tpu.memory_space<smem>>, %arg2: memref<1xi32, #tpu.memory_space<smem>>) -> (i32, i32) {
    %0 = arith.index_cast %arg0 : i32 to index
    %1 = memref.load %arg2[%0] : memref<1xi32, #tpu.memory_space<smem>>
    %c0_i32 = arith.constant 0 : i32
    %c0_i32_0 = arith.constant 0 : i32
    return %1, %c0_i32 : i32, i32
  }
  func.func @transform_2(%arg0: i32, %arg1: memref<1xi32, #tpu.memory_space<smem>>, %arg2: memref<1xi32, #tpu.memory_space<smem>>) -> (i32, i32) {
    %0 = arith.index_cast %arg0 : i32 to index
    %1 = memref.load %arg1[%0] : memref<1xi32, #tpu.memory_space<smem>>
    %c0_i32 = arith.constant 0 : i32
    %c0_i32_0 = arith.constant 0 : i32
    return %1, %c0_i32 : i32, i32
  }
  func.func @transform_3(%arg0: i32, %arg1: memref<1xi32, #tpu.memory_space<smem>>, %arg2: memref<1xi32, #tpu.memory_space<smem>>) -> (i32, i32) {
    %0 = arith.index_cast %arg0 : i32 to index
    %1 = memref.load %arg2[%0] : memref<1xi32, #tpu.memory_space<smem>>
    %c0_i32 = arith.constant 0 : i32
    %c0_i32_0 = arith.constant 0 : i32
    return %c0_i32, %1 : i32, i32
  }
  func.func @transform_4(%arg0: i32, %arg1: memref<1xi32, #tpu.memory_space<smem>>, %arg2: memref<1xi32, #tpu.memory_space<smem>>) -> (i32, i32) {
    %0 = arith.index_cast %arg0 : i32 to index
    %1 = memref.load %arg1[%0] : memref<1xi32, #tpu.memory_space<smem>>
    %c0_i32 = arith.constant 0 : i32
    %c0_i32_0 = arith.constant 0 : i32
    return %1, %c0_i32 : i32, i32
  }
  func.func @transform_5(%arg0: i32, %arg1: memref<1xi32, #tpu.memory_space<smem>>, %arg2: memref<1xi32, #tpu.memory_space<smem>>) -> (i32, i32) {
    %0 = arith.index_cast %arg0 : i32 to index
    %1 = memref.load %arg2[%0] : memref<1xi32, #tpu.memory_space<smem>>
    %c0_i32 = arith.constant 0 : i32
    %c0_i32_0 = arith.constant 0 : i32
    return %c0_i32, %1 : i32, i32
  }
  func.func @transform_6(%arg0: i32, %arg1: memref<1xi32, #tpu.memory_space<smem>>, %arg2: memref<1xi32, #tpu.memory_space<smem>>) -> (i32, i32) {
    %c0_i32 = arith.constant 0 : i32
    %c0_i32_0 = arith.constant 0 : i32
    %c0_i32_1 = arith.constant 0 : i32
    return %c0_i32, %c0_i32_0 : i32, i32
  }
}

</mosaic_0001>

<llo_original>
// kernel: tpu_custom_call.1
$region0: #{tpu_custom_call.1}
  #allocation0 [shape = 'u32[]', space=smem, size = 0x4, offset = 0x4, fixed_abs, tag = 'smem constant byte address 0x4 - core index']
  #allocation1 [shape = 'u32[144,128]{1,0:T(1,128)}', space=vmem, size = 0x12000, scoped, tag = 'internal scratch']
  #allocation2 [shape = 'f32[8,8]{1,0:T(8,128)}', space=vmem, size = 0x1000, scoped, tag = 'scratch operand']
  #allocation3 [shape = 's32[1]{0}', space=sflag, size = 0x4, scoped, tag = 'scoped memory for tpu_custom_call.1']
  #allocation4 [shape = 's32[1]{0:T(128)S(6)}', space=smem, size = 0x200, scoped, tag = 'prefetched SMEM operand 0']
  #allocation5 [shape = 's32[1]{0:T(128)S(6)}', space=smem, size = 0x200, scoped, tag = 'prefetched SMEM operand 1']
  %s0 = inlined_call_operand.<no memory space> [shape: s32[1], index: 0, kind: input, shape index: {}]
  %s1 = inlined_call_operand.<no memory space> [shape: s32[1], index: 1, kind: input, shape index: {}]
  %s2 = inlined_call_operand.vmem [shape: f32[8,256], index: 2, kind: input, shape index: {}]
  %s3 = inlined_call_operand.hbm [shape: f32[8,256], index: 3, kind: input, shape index: {}]
  %s4 = inlined_call_operand.vmem [shape: f32[8,1], index: 4, kind: input, shape index: {}]
  %s5 = inlined_call_operand.vmem [shape: f32[1,8], index: 5, kind: input, shape index: {}]
  %s6 = inlined_call_operand.vmem [shape: s32[8,1], index: 6, kind: input, shape index: {}]
  %s7 = inlined_call_operand.vmem [shape: s32[1,8], index: 7, kind: input, shape index: {}]
  %s8 = inlined_call_operand.hbm [shape: f32[1,1], index: 8, kind: output, shape index: {}]
  %s9 = sld [smem:[#allocation0]]
  $region46: #{tpu_custom_call.1} parent=0
    _
  %s11 = ssub.s32 1, %s9
  %s12 = scalar_select 0, %s11, %s9
  %13 = sst [smem:[#allocation4]] %s0
  %14 = sst [smem:[#allocation5]] %s1
  $region1: #{tpu_custom_call.1} parent=0
    #allocation6 [shape = 'u8[8192]{0}', space=vmem, size = 0x2000, scoped, tag = 'input window, operand 3, single buffered']
    #allocation7 [shape = 's32[1]{0}', space=sflag, size = 0x4, scoped, tag = 'scoped memory for tpu_custom_call.1']
    #allocation8 [shape = 's32[1]{0}', space=sflag, size = 0x4, scoped, tag = 'scoped memory for tpu_custom_call.1']
    #allocation9 [shape = 'u8[512]{0}', space=smem, size = 0x200, scoped, tag = 'output window, operand 0, single buffered']
    %15 = vsyncpa [#allocation7], 0
    %16 = vsyncpa [#allocation8], 0
    // Predicated region
    $region2: #{tpu_custom_call.1} parent=1 // pred_check
      _
    $region3: #{tpu_custom_call.1} parent=1 // pred_check_branch
      %18 = sbr.rel (0) target = $region5
    $region4: #{tpu_custom_call.1} parent=1 // pred_region
      %s19 = sld [smem:[#allocation4]]
      %p20 = scmp.lt.s32.totalorder %s19, 0
      %s21 = scalar_select %p20, %s19, 0
      %s22 = smul.addr %s21, 2
      %s23 = smul.addr %s22, 8
      %s24 = scalar_lea.vmem %s2, %s23
      %s25 = sld [smem:[#allocation4]]
    $region5: #{tpu_custom_call.1} parent=1 // pred_fallthru
      _
    // Predicated region
    $region6: #{tpu_custom_call.1} parent=1 // pred_check
      _
    $region7: #{tpu_custom_call.1} parent=1 // pred_check_branch
      %27 = sbr.rel (0) target = $region9
    $region8: #{tpu_custom_call.1} parent=1 // pred_region
      %s28 = sld [smem:[#allocation5]]
      %s30 = ssub.s32 256, 256
      %31 = vsyncadd [#allocation7], %s30
      %s32 = smul.addr %s28, 2
      %s33 = smul.addr %s32, 128
      %s34 = scalar_lea.hbm %s3, %s33
      %s36 = sshll.u32 [#allocation6], 4
      %s37 = int_to_ptr.vmem [resolvable:$true] %s36
      %39 = dma.hbm_to_vmem [thread:$0]  %s34, 256, %s37, [#allocation7]
    $region9: #{tpu_custom_call.1} parent=1 // pred_fallthru
      _
    // Predicated region
    $region10: #{tpu_custom_call.1} parent=1 // pred_check
      _
    $region11: #{tpu_custom_call.1} parent=1 // pred_check_branch
      %41 = sbr.rel (0) target = $region13
    $region12: #{tpu_custom_call.1} parent=1 // pred_region
      %s42 = sld [smem:[#allocation4]]
      %p43 = scmp.lt.s32.totalorder %s42, 0
      %s44 = scalar_select %p43, %s42, 0
      %s45 = smul.addr %s44, 8
      %s46 = scalar_lea.vmem %s4, %s45
      %s47 = sld [smem:[#allocation4]]
    $region13: #{tpu_custom_call.1} parent=1 // pred_fallthru
      _
    // Predicated region
    $region14: #{tpu_custom_call.1} parent=1 // pred_check
      _
    $region15: #{tpu_custom_call.1} parent=1 // pred_check_branch
      %49 = sbr.rel (0) target = $region17
    $region16: #{tpu_custom_call.1} parent=1 // pred_region
      %s50 = sld [smem:[#allocation5]]
      %p51 = scmp.lt.s32.totalorder %s50, 0
      %s52 = scalar_select %p51, %s50, 0
      %s53 = scalar_lea.vmem %s5, %s52
      %s54 = sld [smem:[#allocation5]]
    $region17: #{tpu_custom_call.1} parent=1 // pred_fallthru
      _
    // Predicated region
    $region18: #{tpu_custom_call.1} parent=1 // pred_check
      _
    $region19: #{tpu_custom_call.1} parent=1 // pred_check_branch
      %56 = sbr.rel (0) target = $region21
    $region20: #{tpu_custom_call.1} parent=1 // pred_region
      %s57 = sld [smem:[#allocation4]]
      %p58 = scmp.lt.s32.totalorder %s57, 0
      %s59 = scalar_select %p58, %s57, 0
      %s60 = smul.addr %s59, 8
      %s61 = scalar_lea.vmem %s6, %s60
      %s62 = sld [smem:[#allocation4]]
    $region21: #{tpu_custom_call.1} parent=1 // pred_fallthru
      _
    // Predicated region
    $region22: #{tpu_custom_call.1} parent=1 // pred_check
      _
    $region23: #{tpu_custom_call.1} parent=1 // pred_check_branch
      %64 = sbr.rel (0) target = $region25
    $region24: #{tpu_custom_call.1} parent=1 // pred_region
      %s65 = sld [smem:[#allocation5]]
      %p66 = scmp.lt.s32.totalorder %s65, 0
      %s67 = scalar_select %p66, %s65, 0
      %s68 = scalar_lea.vmem %s7, %s67
      %s69 = sld [smem:[#allocation5]]
    $region25: #{tpu_custom_call.1} parent=1 // pred_fallthru
      _
    // Predicated region
    $region26: #{tpu_custom_call.1} parent=1 // pred_check
      _
    $region27: #{tpu_custom_call.1} parent=1 // pred_check_branch
      %71 = sbr.rel (0) target = $region29
    $region28: #{tpu_custom_call.1} parent=1 // pred_region
      %72 = dma.done [#allocation7], 256
    $region29: #{tpu_custom_call.1} parent=1 // pred_fallthru
      _
    %s73 = sld [smem:[#allocation4]]
    %p74 = scmp.lt.s32.totalorder %s73, 0
    %s75 = scalar_select %p74, %s73, 0
    %s76 = smul.addr %s75, 2
    %s77 = smul.addr %s76, 8
    %s78 = scalar_lea.vmem %s2, %s77
    %s79 = sld [smem:[#allocation4]]
    %p80 = scmp.lt.s32.totalorder %s79, 0
    %s81 = scalar_select %p80, %s79, 0
    %s82 = smul.addr %s81, 8
    %s83 = scalar_lea.vmem %s4, %s82
    %s84 = sld [smem:[#allocation5]]
    %p85 = scmp.lt.s32.totalorder %s84, 0
    %s86 = scalar_select %p85, %s84, 0
    %s87 = scalar_lea.vmem %s5, %s86
    %s88 = sld [smem:[#allocation4]]
    %p89 = scmp.lt.s32.totalorder %s88, 0
    %s90 = scalar_select %p89, %s88, 0
    %s91 = smul.addr %s90, 8
    %s92 = scalar_lea.vmem %s6, %s91
    %s93 = sld [smem:[#allocation5]]
    %p94 = scmp.lt.s32.totalorder %s93, 0
    %s95 = scalar_select %p94, %s93, 0
    %s96 = scalar_lea.vmem %s7, %s95
    %s97 = sld [smem:[#allocation4]]
    %p98 = scmp.lt.s32.totalorder %s97, 0
    %s99 = scalar_select %p98, %s97, 0
    %s100 = smul.addr %s99, 2
    %s101 = smul.addr %s100, 8
    %s102 = scalar_lea.vmem %s2, %s101
    %s103 = sld [smem:[#allocation4]]
    %s104 = sld [smem:[#allocation5]]
    %s105 = sld [smem:[#allocation4]]
    %p106 = scmp.lt.s32.totalorder %s105, 0
    %s107 = scalar_select %p106, %s105, 0
    %s108 = smul.addr %s107, 8
    %s109 = scalar_lea.vmem %s4, %s108
    %s110 = sld [smem:[#allocation4]]
    %s111 = sld [smem:[#allocation5]]
    %p112 = scmp.lt.s32.totalorder %s111, 0
    %s113 = scalar_select %p112, %s111, 0
    %s114 = scalar_lea.vmem %s5, %s113
    %s115 = sld [smem:[#allocation5]]
    %s116 = sld [smem:[#allocation4]]
    %p117 = scmp.lt.s32.totalorder %s116, 0
    %s118 = scalar_select %p117, %s116, 0
    %s119 = smul.addr %s118, 8
    %s120 = scalar_lea.vmem %s6, %s119
    %s121 = sld [smem:[#allocation4]]
    %s122 = sld [smem:[#allocation5]]
    %p123 = scmp.lt.s32.totalorder %s122, 0
    %s124 = scalar_select %p123, %s122, 0
    %s125 = scalar_lea.vmem %s7, %s124
    %s126 = sld [smem:[#allocation5]]
    %p127 = scmp.eq.s32.totalorder 0, 0
    // Predicated region
    $region30: #{tpu_custom_call.1} parent=1 // pred_check
      %p128 = pneg %p127
    $region31: #{tpu_custom_call.1} parent=1 // pred_check_branch
      %130 = sbr.rel (%p128) target = $region33
    $region32: #{tpu_custom_call.1} parent=1 // pred_region
      %vm131 = vcmask 64512
      %132 = vst.msk [vmem:[#allocation2] sm:$0xff] %vm131, 0.0
    $region33: #{tpu_custom_call.1} parent=1 // pred_fallthru
      _
    %s133 = sld [smem:[#allocation4]]
    %s134 = sld [smem:[#allocation5]]
    %v135 = vld [vmem:[%s102] sm:$0xff]
    %v136 = vld [vmem:[%s102 + $0x8] sm:$0xff]
    %v137 = vld [vmem:[#allocation6] sm:$0xff]
    %v138 = vld [vmem:[#allocation6 + $0x8] sm:$0xff]
    %139 = vmatprep.subr.mxu0 %v138
    %140 = vmatpush1.xpose.msra.mxu0 %v137
    %141 = vmatprep.subr.mxu0 0.0
    %142 = vmatpush1.xpose.msra.mxu0 0.0
    %143 = vmatprep.subr.mxu0 0.0
    %144 = vmatpush1.xpose.msra.mxu0 0.0
    %145 = vmatprep.subr.mxu0 0.0
    %146 = vmatpush1.xpose.msra.mxu0 0.0
    %147 = vmatprep.subr.mxu0 0.0
    %148 = vmatpush1.xpose.msra.mxu0 0.0
    %149 = vmatprep.subr.mxu0 0.0
    %150 = vmatpush1.xpose.msra.mxu0 0.0
    %151 = vmatprep.subr.mxu0 0.0
    %152 = vmatpush1.xpose.msra.mxu0 0.0
    %153 = vmatprep.subr.mxu0 0.0
    %154 = vmatpush1.xpose.msra.mxu0 0.0
    %155 = vmatprep.subr.mxu0 0.0
    %156 = vmatpush1.xpose.msra.mxu0 0.0
    %157 = vmatprep.subr.mxu0 0.0
    %158 = vmatpush1.xpose.msra.mxu0 0.0
    %159 = vmatprep.subr.mxu0 0.0
    %160 = vmatpush1.xpose.msra.mxu0 0.0
    %161 = vmatprep.subr.mxu0 0.0
    %162 = vmatpush1.xpose.msra.mxu0 0.0
    %163 = vmatprep.subr.mxu0 0.0
    %164 = vmatpush1.xpose.msra.mxu0 0.0
    %165 = vmatprep.subr.mxu0 0.0
    %166 = vmatpush1.xpose.msra.mxu0 0.0
    %167 = vmatprep.subr.mxu0 0.0
    %168 = vmatpush1.xpose.msra.mxu0 0.0
    %169 = vmatprep.subr.mxu0 0.0
    %170 = vmatpush1.xpose.msra.mxu0 0.0
    %171 = vmatprep.subr.mxu0 0.0
    %172 = vmatpush1.xpose.msra.mxu0 0.0
    %173 = vmatprep.subr.mxu0 0.0
    %174 = vmatpush1.xpose.msra.mxu0 0.0
    %175 = vmatprep.subr.mxu0 0.0
    %176 = vmatpush1.xpose.msra.mxu0 0.0
    %177 = vmatprep.subr.mxu0 0.0
    %178 = vmatpush1.xpose.msra.mxu0 0.0
    %179 = vmatprep.subr.mxu0 0.0
    %180 = vmatpush1.xpose.msra.mxu0 0.0
    %181 = vmatprep.subr.mxu0 0.0
    %182 = vmatpush1.xpose.msra.mxu0 0.0
    %183 = vmatprep.subr.mxu0 0.0
    %184 = vmatpush1.xpose.msra.mxu0 0.0
    %185 = vmatprep.subr.mxu0 0.0
    %186 = vmatpush1.xpose.msra.mxu0 0.0
    %187 = vmatprep.subr.mxu0 0.0
    %188 = vmatpush1.xpose.msra.mxu0 0.0
    %189 = vmatprep.subr.mxu0 0.0
    %190 = vmatpush1.xpose.msra.mxu0 0.0
    %191 = vmatprep.subr.mxu0 0.0
    %192 = vmatpush1.xpose.msra.mxu0 0.0
    %193 = vmatprep.subr.mxu0 0.0
    %194 = vmatpush1.xpose.msra.mxu0 0.0
    %195 = vmatprep.subr.mxu0 0.0
    %196 = vmatpush1.xpose.msra.mxu0 0.0
    %197 = vmatprep.subr.mxu0 0.0
    %198 = vmatpush1.xpose.msra.mxu0 0.0
    %199 = vmatprep.subr.mxu0 0.0
    %200 = vmatpush1.xpose.msra.mxu0 0.0
    %201 = vmatprep.subr.mxu0 0.0
    %202 = vmatpush1.xpose.msra.mxu0 0.0
    %203 = vmatprep.mubr.f32.mxu0 %v136
    %204 = vmatmul.mubr.f32.gmra.mrb[0].mxu0 %v135
    %v205 = vpop.f32.mrb[0].mxu0
    %v206 = vadd.f32 0.0, %v205
    %v207 = vpop.f32.mrb[0].mxu0
    %208 = vdwg.mxu0
    %v209 = vld [vmem:[%s109] sm:$0xff]
    %v210 = vld [vmem:[%s114] sm:$0x1]
    %212 = vset.pattern.permute.xlu0 0
    %213 = vperm.xlu0 %212, %v209
    %v214 = vpop.permute.xlu0 %213
    %v217 = vlaneseq
    %v218 = vshrl.u32 %v217, 7
    %v219 = vsub.s32 0, %v218
    %v220 = vrot.slane %v210, %v219
    %v222 = vadd.f32 %v214, %v220
    %v223 = vmul.f32 %v206, 2.0
    %v224 = vsub.f32 %v222, %v223
    %v225 = vmax.f32 %v224, 0.0
    %s226 = smul.u32 %s133, 8
    %v227 = vlaneseq
    %v228 = vshrl.u32 %v227, 7
    %v229 = vstv %s226
    %v230 = vadd.s32 %v229, %v228
    %s231 = smul.u32 %s134, 8
    %v232 = vlaneseq
    %v233 = vand.u32 %v232, 127
    %v234 = vstv %s231
    %v235 = vadd.s32 %v234, %v233
    %vm236 = vcmp.gt.s32.totalorder %v235, %v230
    %vm237 = vcmp.lt.s32.totalorder %v235, 8
    %vm238 = vmand %vm236, %vm237
    %v239 = vadd.s32 %v230, 1
    %vm240 = vcmp.eq.s32.totalorder %v235, %v239
    %v241 = vsel %vm240, 2.0, 1.0
    %v242 = vsel %vm238, %v241, 0.0
    %v243 = vld [vmem:[%s120] sm:$0xff]
    %v244 = vld [vmem:[%s125] sm:$0x1]
    %245 = vset.pattern.permute.xlu0 0
    %246 = vperm.xlu0 %245, %v243
    %v247 = vpop.permute.xlu0 %246
    %v248 = vlaneseq
    %v249 = vshrl.u32 %v248, 7
    %v250 = vsub.s32 0, %v249
    %v251 = vrot.slane %v244, %v250
    %vm252 = vcmp.eq.s32.totalorder %v247, %v251
    %v253 = vmax.f32 %v225, 1e-12
    %v254 = vrsqrt.pop %v253
    %v255 = vld [vmem:[#allocation2] sm:$0xff]
    %v256 = vsel %vm252, %v225, 10.0
    %v257 = vmul.f32 %v242, %v256
    %v258 = vmul.f32 %v257, %v254
    %v259 = vadd.f32 %v255, %v258
    %vm260 = vcmask 64512
    %261 = vst.msk [vmem:[#allocation2] sm:$0xff] %vm260, %v259
    // Predicated region
    $region34: #{tpu_custom_call.1} parent=1 // pred_check
      %p262 = pneg %p127
    $region35: #{tpu_custom_call.1} parent=1 // pred_check_branch
      %264 = sbr.rel (%p262) target = $region37
    $region36: #{tpu_custom_call.1} parent=1 // pred_region
      %v265 = vld [vmem:[#allocation2] sm:$0xff]
      %v266 = vsel %vm260, %v265, 0.0
      %267 = vadd.xlane.f32.xlu0 %v266
      %v268 = vpop.xlane.xlu0 %267
      %v269 = vrot.slane %v268, 4
      %v270 = vadd.f32 %v268, %v269
      %v271 = vrot.slane %v270, 2
      %v272 = vadd.f32 %v270, %v271
      %v273 = vrot.slane %v272, 1
      %v274 = vadd.f32 %v272, %v273
      %s275 = vtos %v274
      %s276 = smul.f32 %s275, 0.14285715
      %s277 = scalar_lea.smem [#allocation9], 0
      %278 = sst [smem:[%s277]] %s276
    $region37: #{tpu_custom_call.1} parent=1 // pred_fallthru
      _
    // Predicated region
    $region38: #{tpu_custom_call.1} parent=1 // pred_check
      _
    $region39: #{tpu_custom_call.1} parent=1 // pred_check_branch
      %280 = sbr.rel (0) target = $region41
    $region40: #{tpu_custom_call.1} parent=1 // pred_region
      %s282 = ssub.s32 16, 16
      %283 = vsyncadd [#allocation8], %s282
      %286 = dma.smem_to_hbm [#allocation9], 16, %s8, [#allocation8]
    $region41: #{tpu_custom_call.1} parent=1 // pred_fallthru
      _
    // Predicated region
    $region42: #{tpu_custom_call.1} parent=1 // pred_check
      _
    $region43: #{tpu_custom_call.1} parent=1 // pred_check_branch
      %288 = sbr.rel (0) target = $region45
    $region44: #{tpu_custom_call.1} parent=1 // pred_region
      %289 = dma.done [#allocation8], 16
    $region45: #{tpu_custom_call.1} parent=1 // pred_fallthru
      _
    %290 = sfence
    %291 = vsyncpa [#allocation7], 1
    %292 = vsyncpa [#allocation8], 1

</llo_original>
